<compile_context>
chip_gen: v5e
topology: v5e:2x2
jax: 0.10.0
libtpu: 0.0.40
codegen_flags: <defaults>
</compile_context>

<pallas_src>
import jax
import jax.numpy as jnp
import numpy as np
from jax import lax
from jax.experimental import pallas as pl
from jax.experimental.pallas import tpu as pltpu

# TODO(synk): RoBERTa backbone / tokenization in initialize_node() has no
# clean Pallas equivalent; node features are taken as a dense input instead.


def _fused_heads_kernel(x_ref, a_ref, wx_ref, wa_ref, bn_ref, we_ref, be_ref,
                        h_out_ref, e_out_ref):
    """One (head, batch-block) grid step: full EGNN head on Bt tasks."""
    d = pl.program_id(0)                      # head index (outer grid axis)

    x = x_ref[...]                            # (Bt, N, D)  f32
    a = a_ref[...]                            # (Bt, N, N)  f32
    Bt, N, D = x.shape
    Dh = wx_ref.shape[-1]

    # --- 1. row-normalize adjacency --------------------------------------
    a_norm = a / (jnp.sum(a, axis=-1, keepdims=True) + 1e-6)

    # --- 2. neighbor aggregation (batched MXU matmul) ---------------------
    agg = lax.dot_general(
        a_norm, x,
        dimension_numbers=(((2,), (1,)), ((0,), (0,))),
        preferred_element_type=jnp.float32)   # (Bt, N, D)

    # --- 3. node update, concat-free: relu(x @ Wx + agg @ Wa + bn) --------
    # Flatten tasks into rows so each MXU matmul sees Bt*N rows at once.
    x2 = x.reshape(Bt * N, D)
    agg2 = agg.reshape(Bt * N, D)
    h = jnp.dot(x2, wx_ref[0], preferred_element_type=jnp.float32)
    h = h + jnp.dot(agg2, wa_ref[0], preferred_element_type=jnp.float32)
    h = jnp.maximum(h + bn_ref[0], 0.0)       # (Bt*N, Dh)

    # --- 4. edge update: weighted pairwise sq-distance -> sigmoid ---------
    # d_ij = sum_d w_d (h_id - h_jd)^2 = s_i + s_j - 2 * (h*w) @ h^T
    hw = h * we_ref[0]                        # (Bt*N, Dh)
    h3 = h.reshape(Bt, N, Dh)
    hw3 = hw.reshape(Bt, N, Dh)
    cross = lax.dot_general(                  # contraction over last dims,
        hw3, h3,                              # no explicit transpose
        dimension_numbers=(((2,), (2,)), ((0,), (0,))),
        preferred_element_type=jnp.float32)   # (Bt, N, N)
    p = hw3 * h3
    s_col = jnp.sum(p, axis=-1, keepdims=True)     # (Bt, N, 1)
    s_row = jnp.sum(p, axis=-1)[:, None, :]        # (Bt, 1, N)
    logit = s_col + s_row - 2.0 * cross            # (Bt, N, N)

    be = be_ref[d]                            # scalar bias from SMEM
    e = jax.nn.sigmoid(be - logit)

    h_out_ref[0] = h.astype(h_out_ref.dtype)       # (Bt*N, Dh)
    e_out_ref[0] = e.astype(e_out_ref.dtype)       # (Bt, N, N)


def hgraph_forward(x, a, wx, wa, bn, we, be, *, batch_tile=None):
    """Fused multi-head EGNN forward.

    x : (B, N, D)    node features
    a : (B, N, N)    initial adjacency / edge matrix
    wx: (H, D, Dh)   node-update weight for x         (H = n_domain)
    wa: (H, D, Dh)   node-update weight for aggregation
    bn: (H, 1, Dh)   node-update bias
    we: (H, 1, Dh)   edge-metric per-dim weights
    be: (H,)         edge bias (SMEM scalar per head)

    returns h: (H, B, N, Dh), e: (H, B, N, N)
    """
    B, N, D = x.shape
    n_domain, _, Dh = wx.shape

    Bt = B if batch_tile is None else batch_tile
    Bt = min(Bt, B)
    assert B % Bt == 0, "batch must be divisible by the batch tile"
    nb = B // Bt

    grid_spec = pl.GridSpec(
        grid=(n_domain, nb),                  # head axis OUTER: weight blocks
        in_specs=[                            # constant across inner steps
            pl.BlockSpec((Bt, N, D), lambda d, b: (b, 0, 0)),
            pl.BlockSpec((Bt, N, N), lambda d, b: (b, 0, 0)),
            pl.BlockSpec((1, D, Dh), lambda d, b: (d, 0, 0)),
            pl.BlockSpec((1, D, Dh), lambda d, b: (d, 0, 0)),
            pl.BlockSpec((1, 1, Dh), lambda d, b: (d, 0, 0)),
            pl.BlockSpec((1, 1, Dh), lambda d, b: (d, 0, 0)),
            pl.BlockSpec(memory_space=pltpu.MemorySpace.SMEM),   # be (scalars)
        ],
        out_specs=[
            pl.BlockSpec((1, Bt * N, Dh), lambda d, b: (d, b, 0)),
            pl.BlockSpec((1, Bt, N, N), lambda d, b: (d, b, 0, 0)),
        ],
    )

    h_all, e_all = pl.pallas_call(
        _fused_heads_kernel,
        out_shape=(
            jax.ShapeDtypeStruct((n_domain, B * N, Dh), jnp.float32),
            jax.ShapeDtypeStruct((n_domain, B, N, N), jnp.float32),
        ),
        grid_spec=grid_spec,
        compiler_params=pltpu.CompilerParams(
            dimension_semantics=("parallel", "parallel")),
    )(x, a, wx, wa, bn, we, be)

    # Free wrapper-side layout plumbing back to the (H, B, N, Dh) view.
    return h_all.reshape(n_domain, B, N, Dh), e_all


class HGraphNetworkPallas:
    """n_domain EGNN heads over pre-initialized node features, one kernel."""

    def __init__(self, n_domain, feat_dim, hidden_dim, key):
        self.n_domain = n_domain
        self.heads = {}                        # PyTorch-layout params (ref)
        wx, wa, bn, we, be = [], [], [], [], []
        for i in range(n_domain):
            key, k1, k2 = jax.random.split(key, 3)
            w_node = (jax.random.normal(k1, (2 * feat_dim, hidden_dim),
                                        jnp.float32)
                      * (1.0 / np.sqrt(2 * feat_dim)))
            b_node = jnp.zeros((1, hidden_dim), jnp.float32)
            w_edge = jnp.abs(jax.random.normal(k2, (1, hidden_dim),
                                               jnp.float32)) * 0.1
            b_edge = jnp.zeros((1, 1), jnp.float32)
            self.heads[f'head{i + 1}'] = (w_node, b_node, w_edge, b_edge)
            wx.append(w_node[:feat_dim])       # concat([x, agg]) @ Wn ==
            wa.append(w_node[feat_dim:])       #   x @ Wn[:D] + agg @ Wn[D:]
            bn.append(b_node)
            we.append(w_edge)
            be.append(b_edge[0, 0])
        self.wx = jnp.stack(wx)                # (H, D, Dh)
        self.wa = jnp.stack(wa)                # (H, D, Dh)
        self.bn = jnp.stack(bn)                # (H, 1, Dh)
        self.we = jnp.stack(we)                # (H, 1, Dh)
        self.be = jnp.stack(be)                # (H,)

    def __call__(self, x, a):
        h_all, e_all = hgraph_forward(x, a, self.wx, self.wa,
                                      self.bn, self.we, self.be)
        return {f'head{i + 1}': (h_all[i], e_all[i])
                for i in range(self.n_domain)}

    def reference(self, x, a):
        """Pure-JAX reference (mathematically identical to the PyTorch head)."""
        out = {}
        D = x.shape[-1]
        for i in range(self.n_domain):
            name = f'head{i + 1}'
            w_node, b_node, w_edge, b_edge = self.heads[name]
            a_norm = a / (jnp.sum(a, axis=-1, keepdims=True) + 1e-6)
            agg = jnp.einsum('bij,bjd->bid', a_norm, x)
            # split form == concatenate([x, agg], -1) @ w_node
            h = (jnp.einsum('bnd,de->bne', x, w_node[:D])
                 + jnp.einsum('bnd,de->bne', agg, w_node[D:]))
            h = jnp.maximum(h + b_node, 0.0)
            hw = h * w_edge
            s = jnp.sum(hw * h, axis=-1, keepdims=True)
            cross = jnp.einsum('bid,bjd->bij', hw, h)
            logit = s + jnp.swapaxes(s, -1, -2) - 2.0 * cross
            e = jax.nn.sigmoid(b_edge[0, 0] - logit)
            out[name] = (h, e)
        return out


if __name__ == "__main__":
    B, N, D, Dh = 2, 8, 32, 32       # tasks, nodes/task, feature dim, hidden
    n_domain = 2

    key = jax.random.PRNGKey(0)
    key, kx, ka, kp = jax.random.split(key, 4)

    # node features (would come from the RoBERTa backbone in the original)
    x = jax.random.normal(kx, (B, N, D), jnp.float32)
    # initial edge/adjacency matrix in [0, 1] with self-loops
    a = jax.nn.sigmoid(jax.random.normal(ka, (B, N, N), jnp.float32))
    a = a + jnp.eye(N, dtype=jnp.float32)[None]

    model = HGraphNetworkPallas(n_domain, D, Dh, kp)

    out = model(x, a)
    out = jax.tree_util.tree_map(jax.block_until_ready, out)

    ref = model.reference(x, a)
    for name in out:
        h_k, e_k = out[name]
        h_r, e_r = ref[name]
        np.testing.assert_allclose(np.asarray(h_k), np.asarray(h_r),
                                   rtol=1e-3, atol=1e-3)
        np.testing.assert_allclose(np.asarray(e_k), np.asarray(e_r),
                                   rtol=1e-3, atol=1e-3)

    print("KERNEL_OK")
</pallas_src>

<mosaic_0001>
module attributes {stable_mosaic.version = 11 : i64} {
  func.func @_fused_heads_kernel(%arg0: i32, %arg1: i32, %arg2: memref<2x8x32xf32, #tpu.memory_space<vmem>>, %arg3: memref<2x8x8xf32, #tpu.memory_space<vmem>>, %arg4: memref<1x32x32xf32, #tpu.memory_space<vmem>>, %arg5: memref<1x32x32xf32, #tpu.memory_space<vmem>>, %arg6: memref<1x1x32xf32, #tpu.memory_space<vmem>>, %arg7: memref<1x1x32xf32, #tpu.memory_space<vmem>>, %arg8: memref<2xf32, #tpu.memory_space<smem>>, %arg9: memref<1x16x32xf32, #tpu.memory_space<vmem>>, %arg10: memref<1x2x8x8xf32, #tpu.memory_space<vmem>>) attributes {dimension_semantics = [#tpu.dimension_semantics<parallel>, #tpu.dimension_semantics<parallel>], iteration_bounds = array<i64: 2, 1>, scalar_prefetch = 0 : i64, scratch_operands = 0 : i64, tpu.core_type = #tpu.core_type<tc>, window_params = [{transform_indices = @transform_0, window_bounds = array<i64: 2, 8, 32>}, {transform_indices = @transform_1, window_bounds = array<i64: 2, 8, 8>}, {transform_indices = @transform_2, window_bounds = array<i64: 1, 32, 32>}, {transform_indices = @transform_3, window_bounds = array<i64: 1, 32, 32>}, {transform_indices = @transform_4, window_bounds = array<i64: 1, 1, 32>}, {transform_indices = @transform_5, window_bounds = array<i64: 1, 1, 32>}, {transform_indices = @transform_6, window_bounds = array<i64: 2>}, {transform_indices = @transform_7, window_bounds = array<i64: 1, 16, 32>}, {transform_indices = @transform_8, window_bounds = array<i64: 1, 2, 8, 8>}]} {
    %c0 = arith.constant 0 : index
    %c0_0 = arith.constant 0 : index
    %c0_1 = arith.constant 0 : index
    %0 = vector.load %arg2[%c0, %c0_0, %c0_1] : memref<2x8x32xf32, #tpu.memory_space<vmem>>, vector<2x8x32xf32>
    %c0_2 = arith.constant 0 : index
    %c0_3 = arith.constant 0 : index
    %c0_4 = arith.constant 0 : index
    %1 = vector.load %arg3[%c0_2, %c0_3, %c0_4] : memref<2x8x8xf32, #tpu.memory_space<vmem>>, vector<2x8x8xf32>
    %cst = arith.constant dense<0.000000e+00> : vector<2x8xf32>
    %2 = vector.multi_reduction <add>, %1, %cst [2] : vector<2x8x8xf32> to vector<2x8xf32>
    %3 = vector.shape_cast %2 : vector<2x8xf32> to vector<2x8x1xf32>
    %cst_5 = arith.constant 9.99999997E-7 : f32
    %4 = vector.broadcast %cst_5 : f32 to vector<2x8x1xf32>
    %5 = arith.addf %3, %4 : vector<2x8x1xf32>
    %6 = vector.broadcast %5 : vector<2x8x1xf32> to vector<2x8x8xf32>
    %7 = arith.divf %1, %6 : vector<2x8x8xf32>
    %cst_6 = arith.constant dense<0.000000e+00> : vector<2x8x32xf32>
    %8 = tpu.matmul %7, %0, %cst_6 {dimension_numbers = #tpu.dot_dimension_numbers<[2], [1], [1], [2], [0, 0, 0, 1, 1, 2], [0], [0]>} : vector<2x8x8xf32>, vector<2x8x32xf32>, vector<2x8x32xf32> -> vector<2x8x32xf32>
    %9 = vector.shape_cast %0 : vector<2x8x32xf32> to vector<16x32xf32>
    %10 = vector.shape_cast %8 : vector<2x8x32xf32> to vector<16x32xf32>
    %c0_7 = arith.constant 0 : index
    %c0_8 = arith.constant 0 : index
    %c0_9 = arith.constant 0 : index
    %11 = vector.load %arg4[%c0_7, %c0_8, %c0_9] : memref<1x32x32xf32, #tpu.memory_space<vmem>>, vector<1x32x32xf32>
    %12 = vector.shape_cast %11 : vector<1x32x32xf32> to vector<32x32xf32>
    %cst_10 = arith.constant dense<0.000000e+00> : vector<16x32xf32>
    %13 = tpu.matmul %9, %12, %cst_10 {dimension_numbers = #tpu.dot_dimension_numbers<[1], [0], [0], [1], [0, 0, 1, 1], [], []>} : vector<16x32xf32>, vector<32x32xf32>, vector<16x32xf32> -> vector<16x32xf32>
    %c0_11 = arith.constant 0 : index
    %c0_12 = arith.constant 0 : index
    %c0_13 = arith.constant 0 : index
    %14 = vector.load %arg5[%c0_11, %c0_12, %c0_13] : memref<1x32x32xf32, #tpu.memory_space<vmem>>, vector<1x32x32xf32>
    %15 = vector.shape_cast %14 : vector<1x32x32xf32> to vector<32x32xf32>
    %cst_14 = arith.constant dense<0.000000e+00> : vector<16x32xf32>
    %16 = tpu.matmul %10, %15, %cst_14 {dimension_numbers = #tpu.dot_dimension_numbers<[1], [0], [0], [1], [0, 0, 1, 1], [], []>} : vector<16x32xf32>, vector<32x32xf32>, vector<16x32xf32> -> vector<16x32xf32>
    %17 = arith.addf %13, %16 : vector<16x32xf32>
    %c0_15 = arith.constant 0 : index
    %c0_16 = arith.constant 0 : index
    %c0_17 = arith.constant 0 : index
    %18 = vector.load %arg6[%c0_15, %c0_16, %c0_17] : memref<1x1x32xf32, #tpu.memory_space<vmem>>, vector<1x1x32xf32>
    %19 = vector.shape_cast %18 : vector<1x1x32xf32> to vector<1x32xf32>
    %20 = vector.broadcast %19 : vector<1x32xf32> to vector<16x32xf32>
    %21 = arith.addf %17, %20 : vector<16x32xf32>
    %cst_18 = arith.constant 0.000000e+00 : f32
    %22 = vector.broadcast %cst_18 : f32 to vector<16x32xf32>
    %23 = arith.maximumf %21, %22 : vector<16x32xf32>
    %c0_19 = arith.constant 0 : index
    %c0_20 = arith.constant 0 : index
    %c0_21 = arith.constant 0 : index
    %24 = vector.load %arg7[%c0_19, %c0_20, %c0_21] : memref<1x1x32xf32, #tpu.memory_space<vmem>>, vector<1x1x32xf32>
    %25 = vector.shape_cast %24 : vector<1x1x32xf32> to vector<1x32xf32>
    %26 = vector.broadcast %25 : vector<1x32xf32> to vector<16x32xf32>
    %27 = arith.mulf %23, %26 : vector<16x32xf32>
    %28 = vector.shape_cast %23 : vector<16x32xf32> to vector<2x8x32xf32>
    %29 = vector.shape_cast %27 : vector<16x32xf32> to vector<2x8x32xf32>
    %cst_22 = arith.constant dense<0.000000e+00> : vector<2x8x8xf32>
    %30 = tpu.matmul %29, %28, %cst_22 {dimension_numbers = #tpu.dot_dimension_numbers<[2], [2], [1], [1], [0, 0, 0, 1, 1, 1], [0], [0]>} : vector<2x8x32xf32>, vector<2x8x32xf32>, vector<2x8x8xf32> -> vector<2x8x8xf32>
    %31 = arith.mulf %29, %28 : vector<2x8x32xf32>
    %cst_23 = arith.constant dense<0.000000e+00> : vector<2x8xf32>
    %32 = vector.multi_reduction <add>, %31, %cst_23 [2] : vector<2x8x32xf32> to vector<2x8xf32>
    %33 = vector.shape_cast %32 : vector<2x8xf32> to vector<2x8x1xf32>
    %cst_24 = arith.constant dense<0.000000e+00> : vector<2x8xf32>
    %34 = vector.multi_reduction <add>, %31, %cst_24 [2] : vector<2x8x32xf32> to vector<2x8xf32>
    %35 = vector.shape_cast %34 : vector<2x8xf32> to vector<2x1x8xf32>
    %36 = vector.broadcast %33 : vector<2x8x1xf32> to vector<2x8x8xf32>
    %37 = vector.broadcast %35 : vector<2x1x8xf32> to vector<2x8x8xf32>
    %38 = arith.addf %36, %37 : vector<2x8x8xf32>
    %cst_25 = arith.constant 2.000000e+00 : f32
    %39 = vector.broadcast %cst_25 : f32 to vector<2x8x8xf32>
    %40 = arith.mulf %39, %30 : vector<2x8x8xf32>
    %41 = arith.subf %38, %40 : vector<2x8x8xf32>
    %42 = arith.index_cast %arg0 : i32 to index
    %43 = memref.load %arg8[%42] : memref<2xf32, #tpu.memory_space<smem>>
    %44 = vector.broadcast %43 : f32 to vector<2x8x8xf32>
    %45 = arith.subf %44, %41 : vector<2x8x8xf32>
    %46 = arith.negf %45 : vector<2x8x8xf32>
    %47 = math.exp %46 : vector<2x8x8xf32>
    %cst_26 = arith.constant 1.000000e+00 : f32
    %48 = vector.broadcast %cst_26 : f32 to vector<2x8x8xf32>
    %49 = arith.addf %48, %47 : vector<2x8x8xf32>
    %50 = arith.divf %48, %49 : vector<2x8x8xf32>
    %c0_27 = arith.constant 0 : index
    %c0_28 = arith.constant 0 : index
    %c0_29 = arith.constant 0 : index
    %51 = vector.load %arg9[%c0_27, %c0_28, %c0_29] : memref<1x16x32xf32, #tpu.memory_space<vmem>>, vector<1x16x32xf32>
    %52 = vector.shape_cast %51 : vector<1x16x32xf32> to vector<16x32xf32>
    %53 = vector.shape_cast %23 : vector<16x32xf32> to vector<1x16x32xf32>
    tpu.vector_store %arg9[%c0_27, %c0_28, %c0_29], %53 {strides = array<i32>} : memref<1x16x32xf32, #tpu.memory_space<vmem>>, vector<1x16x32xf32>,
    %c0_30 = arith.constant 0 : index
    %c0_31 = arith.constant 0 : index
    %c0_32 = arith.constant 0 : index
    %c0_33 = arith.constant 0 : index
    %54 = vector.load %arg10[%c0_30, %c0_31, %c0_32, %c0_33] : memref<1x2x8x8xf32, #tpu.memory_space<vmem>>, vector<1x2x8x8xf32>
    %55 = vector.shape_cast %54 : vector<1x2x8x8xf32> to vector<2x8x8xf32>
    %56 = vector.shape_cast %50 : vector<2x8x8xf32> to vector<1x2x8x8xf32>
    tpu.vector_store %arg10[%c0_30, %c0_31, %c0_32, %c0_33], %56 {strides = array<i32>} : memref<1x2x8x8xf32, #tpu.memory_space<vmem>>, vector<1x2x8x8xf32>,
    return
  }
  func.func @transform_0(%arg0: i32, %arg1: i32) -> (i32, i32, i32) {
    %c0_i32 = arith.constant 0 : i32
    %c0_i32_0 = arith.constant 0 : i32
    %c0_i32_1 = arith.constant 0 : i32
    return %arg1, %c0_i32, %c0_i32_0 : i32, i32, i32
  }
  func.func @transform_1(%arg0: i32, %arg1: i32) -> (i32, i32, i32) {
    %c0_i32 = arith.constant 0 : i32
    %c0_i32_0 = arith.constant 0 : i32
    %c0_i32_1 = arith.constant 0 : i32
    return %arg1, %c0_i32, %c0_i32_0 : i32, i32, i32
  }
  func.func @transform_2(%arg0: i32, %arg1: i32) -> (i32, i32, i32) {
    %c0_i32 = arith.constant 0 : i32
    %c0_i32_0 = arith.constant 0 : i32
    %c0_i32_1 = arith.constant 0 : i32
    return %arg0, %c0_i32, %c0_i32_0 : i32, i32, i32
  }
  func.func @transform_3(%arg0: i32, %arg1: i32) -> (i32, i32, i32) {
    %c0_i32 = arith.constant 0 : i32
    %c0_i32_0 = arith.constant 0 : i32
    %c0_i32_1 = arith.constant 0 : i32
    return %arg0, %c0_i32, %c0_i32_0 : i32, i32, i32
  }
  func.func @transform_4(%arg0: i32, %arg1: i32) -> (i32, i32, i32) {
    %c0_i32 = arith.constant 0 : i32
    %c0_i32_0 = arith.constant 0 : i32
    %c0_i32_1 = arith.constant 0 : i32
    return %arg0, %c0_i32, %c0_i32_0 : i32, i32, i32
  }
  func.func @transform_5(%arg0: i32, %arg1: i32) -> (i32, i32, i32) {
    %c0_i32 = arith.constant 0 : i32
    %c0_i32_0 = arith.constant 0 : i32
    %c0_i32_1 = arith.constant 0 : i32
    return %arg0, %c0_i32, %c0_i32_0 : i32, i32, i32
  }
  func.func @transform_6(%arg0: i32, %arg1: i32) -> i32 {
    %c0_i32 = arith.constant 0 : i32
    %c0_i32_0 = arith.constant 0 : i32
    return %c0_i32 : i32
  }
  func.func @transform_7(%arg0: i32, %arg1: i32) -> (i32, i32, i32) {
    %c0_i32 = arith.constant 0 : i32
    %c0_i32_0 = arith.constant 0 : i32
    return %arg0, %arg1, %c0_i32 : i32, i32, i32
  }
  func.func @transform_8(%arg0: i32, %arg1: i32) -> (i32, i32, i32, i32) {
    %c0_i32 = arith.constant 0 : i32
    %c0_i32_0 = arith.constant 0 : i32
    %c0_i32_1 = arith.constant 0 : i32
    return %arg0, %arg1, %c0_i32, %c0_i32_0 : i32, i32, i32, i32
  }
}

</mosaic_0001>

<llo_original>
// kernel: tpu_custom_call.1
$region0: #{tpu_custom_call.1}
  #allocation0 [shape = 'u32[]', space=smem, size = 0x4, offset = 0x4, fixed_abs, tag = 'smem constant byte address 0x4 - core index']
  #allocation1 [shape = 'u32[72,128]{1,0:T(1,128)}', space=vmem, size = 0x9000, scoped, tag = 'internal scratch']
  %s0 = inlined_call_operand.hbm [shape: f32[2,8,32], index: 0, kind: input, shape index: {}]
  %s1 = inlined_call_operand.hbm [shape: f32[2,8,8], index: 1, kind: input, shape index: {}]
  %s2 = inlined_call_operand.hbm [shape: f32[2,32,32], index: 2, kind: input, shape index: {}]
  %s3 = inlined_call_operand.hbm [shape: f32[2,32,32], index: 3, kind: input, shape index: {}]
  %s4 = inlined_call_operand.vmem [shape: f32[2,1,32], index: 4, kind: input, shape index: {}]
  %s5 = inlined_call_operand.vmem [shape: f32[2,1,32], index: 5, kind: input, shape index: {}]
  %s6 = inlined_call_operand.vmem [shape: f32[2], index: 6, kind: input, shape index: {}]
  %s7 = inlined_call_operand.hbm [shape: f32[2,16,32], index: 7, kind: output, shape index: {0}]
  %s8 = inlined_call_operand.hbm [shape: f32[2,2,8,8], index: 8, kind: output, shape index: {1}]
  %9 = xla_tuple %s7, %s8
  %s10 = sld [smem:[#allocation0]]
  $region89: #{tpu_custom_call.1} parent=0
    _
  %s12 = ssub.s32 1, %s10
  %s13 = scalar_select 0, %s12, %s10
  $region1: #{tpu_custom_call.1} parent=0
    #allocation2 [shape = 'u8[8192]{0}', space=vmem, size = 0x2000, scoped, tag = 'input window, operand 0, single buffered']
    #allocation3 [shape = 's32[2]{0}', space=sflag, size = 0x8, scoped, tag = 'scoped memory for tpu_custom_call.1']
    #allocation4 [shape = 's32[2]{0}', space=sflag, size = 0x8, scoped, tag = 'scoped memory for tpu_custom_call.1']
    #allocation5 [shape = 's32[2]{0}', space=sflag, size = 0x8, scoped, tag = 'scoped memory for tpu_custom_call.1']
    #allocation6 [shape = 'u8[8192]{0}', space=vmem, size = 0x2000, scoped, tag = 'input window, operand 1, single buffered']
    #allocation7 [shape = 's32[1]{0}', space=sflag, size = 0x4, scoped, tag = 'scoped memory for tpu_custom_call.1']
    #allocation8 [shape = 'u8[32768]{0}', space=vmem, size = 0x8000, scoped, tag = 'input window, operand 2']
    #allocation9 [shape = 'u8[32768]{0}', space=vmem, size = 0x8000, scoped, tag = 'input window, operand 3']
    #allocation10 [shape = 'u8[512]{0}', space=smem, size = 0x200, scoped, tag = 'input window, operand 6, single buffered']
    #allocation11 [shape = 'u8[16384]{0}', space=vmem, size = 0x4000, scoped, tag = 'output window, operand 0']
    #allocation12 [shape = 'u8[16384]{0}', space=vmem, size = 0x4000, scoped, tag = 'output window, operand 1']
    #allocation13 [shape = 's32[2]{0}', space=sflag, size = 0x8, scoped, tag = 'scoped memory for tpu_custom_call.1']
    %14 = vsyncpa [#allocation3], 0
    %15 = vsyncpa [#allocation7], 0
    %16 = vsyncpa [#allocation5], 0
    %17 = vsyncpa [#allocation4], 0
    %s18 = scalar_lea.sflag [#allocation4], 1
    %19 = vsyncpa %s18, 0
    %20 = vsyncpa [#allocation13], 0
    %s21 = scalar_lea.sflag [#allocation13], 1
    %22 = vsyncpa %s21, 0
    loop: start=0, step=1, limit=4
    $region2: #{tpu_custom_call.1} parent=1 // loop_pre_header
      _
    $region3: #{tpu_custom_call.1} parent=1 // loop_header
      %s24 = sphi 0, %s28
      %p25 = scmp.ge.s32.totalorder %s24, 4
      %s31 = sphi 0, %s43
      %s32 = sphi 0, %s39
      %s33 = sphi 0, %s31
      %s34 = sphi 0, %s32
      %s35 = sphi 0, %s33
      %s36 = sphi 0, %s34
      %s46 = sphi 0, %s48
      %s49 = sphi 0, %s46
      %s50 = sphi 0, %s49
      %s66 = sphi 0, %s50
      %s72 = sphi 0, %s74
      %s75 = sphi 0, %s72
      %s76 = sphi 0, %s75
      %s92 = sphi 0, %s76
      %s98 = sphi 0, %s100
      %s101 = sphi 0, %s98
      %s102 = sphi 0, %s101
      %s118 = sphi 0, %s102
      %s124 = sphi 0, %s126
      %s127 = sphi 0, %s124
      %s128 = sphi 0, %s127
      %s144 = sphi 0, %s128
      %s150 = sphi 0, %s152
      %s153 = sphi 0, %s150
      %s154 = sphi 0, %s153
      %s170 = sphi 0, %s154
      %s176 = sphi 0, %s178
      %s179 = sphi 0, %s176
      %s180 = sphi 0, %s179
      %s196 = sphi 0, %s180
      %s200 = sphi 0, %s200
      %s202 = sphi 0, %s200
      %s203 = sphi 0, %s202
      %s217 = sphi 0, %s203
      %s225 = sphi 0, %s227
      %s228 = sphi 0, %s225
      %s229 = sphi 0, %s228
      %s245 = sphi 0, %s229
      %s253 = sphi 0, %s255
      %s256 = sphi 0, %s253
      %s257 = sphi 0, %s256
      %s273 = sphi 0, %s257
    $region4: #{tpu_custom_call.1} parent=1 // loop_header_branch
      %27 = sbr.rel (%p25) target = $region8
    $region5: #{tpu_custom_call.1} parent=1 // loop_body
      %s29 = ssub.s32 %s24, 1
      %s30 = ssub.s32 %s24, 2
      %s37 = sadd.s32 1, %s32
      %p38 = scmp.ge.s32.totalorder %s37, 1
      %s39 = scalar_select %p38, 0, %s37
      %s40 = sadd.s32 1, %s31
      %s41 = scalar_select %p38, %s40, %s31
      %p42 = scmp.ge.s32.totalorder %s41, 2
      %s43 = scalar_select %p42, 0, %s41
      %s44 = ssub.s32 %s32, %s39
      %p45 = scmp.eq.s32.totalorder %s44, 0
      %s47 = sadd.s32 %s46, 1
      %s48 = scalar_select %p45, %s46, %s47
      %p51 = pneg %p45
      %p52 = scmp.eq.s32.totalorder %s24, 1
      %p53 = por %p51, %p52
      %p54 = scmp.ne.s32.totalorder %s46, %s49
      %p55 = scmp.eq.s32.totalorder %s24, 0
      %p56 = por %p54, %p55
      %p57 = scmp.ne.s32.totalorder %s46, %s49
      %p58 = scmp.eq.s32.totalorder %s29, 1
      %p59 = por %p57, %p58
      %p60 = scmp.ne.s32.totalorder %s49, %s50
      %p61 = scmp.eq.s32.totalorder %s29, 0
      %p62 = por %p60, %p61
      %p63 = scmp.ne.s32.totalorder %s49, %s50
      %p64 = scmp.eq.s32.totalorder %s30, 1
      %p65 = por %p63, %p64
      %p67 = scmp.ne.s32.totalorder %s50, %s66
      %p68 = scmp.eq.s32.totalorder %s30, 0
      %p69 = por %p67, %p68
      %s70 = ssub.s32 %s32, %s39
      %p71 = scmp.eq.s32.totalorder %s70, 0
      %s73 = sadd.s32 %s72, 1
      %s74 = scalar_select %p71, %s72, %s73
      %p77 = pneg %p71
      %p78 = scmp.eq.s32.totalorder %s24, 1
      %p79 = por %p77, %p78
      %p80 = scmp.ne.s32.totalorder %s72, %s75
      %p81 = scmp.eq.s32.totalorder %s24, 0
      %p82 = por %p80, %p81
      %p83 = scmp.ne.s32.totalorder %s72, %s75
      %p84 = scmp.eq.s32.totalorder %s29, 1
      %p85 = por %p83, %p84
      %p86 = scmp.ne.s32.totalorder %s75, %s76
      %p87 = scmp.eq.s32.totalorder %s29, 0
      %p88 = por %p86, %p87
      %p89 = scmp.ne.s32.totalorder %s75, %s76
      %p90 = scmp.eq.s32.totalorder %s30, 1
      %p91 = por %p89, %p90
      %p93 = scmp.ne.s32.totalorder %s76, %s92
      %p94 = scmp.eq.s32.totalorder %s30, 0
      %p95 = por %p93, %p94
      %s96 = ssub.s32 %s31, %s43
      %p97 = scmp.eq.s32.totalorder %s96, 0
      %s99 = sadd.s32 %s98, 1
      %s100 = scalar_select %p97, %s98, %s99
      %p103 = pneg %p97
      %p104 = scmp.eq.s32.totalorder %s24, 1
      %p105 = por %p103, %p104
      %p106 = scmp.ne.s32.totalorder %s98, %s101
      %p107 = scmp.eq.s32.totalorder %s24, 0
      %p108 = por %p106, %p107
      %p109 = scmp.ne.s32.totalorder %s98, %s101
      %p110 = scmp.eq.s32.totalorder %s29, 1
      %p111 = por %p109, %p110
      %p112 = scmp.ne.s32.totalorder %s101, %s102
      %p113 = scmp.eq.s32.totalorder %s29, 0
      %p114 = por %p112, %p113
      %p115 = scmp.ne.s32.totalorder %s101, %s102
      %p116 = scmp.eq.s32.totalorder %s30, 1
      %p117 = por %p115, %p116
      %p119 = scmp.ne.s32.totalorder %s102, %s118
      %p120 = scmp.eq.s32.totalorder %s30, 0
      %p121 = por %p119, %p120
      %s122 = ssub.s32 %s31, %s43
      %p123 = scmp.eq.s32.totalorder %s122, 0
      %s125 = sadd.s32 %s124, 1
      %s126 = scalar_select %p123, %s124, %s125
      %p129 = pneg %p123
      %p130 = scmp.eq.s32.totalorder %s24, 1
      %p131 = por %p129, %p130
      %p132 = scmp.ne.s32.totalorder %s124, %s127
      %p133 = scmp.eq.s32.totalorder %s24, 0
      %p134 = por %p132, %p133
      %p135 = scmp.ne.s32.totalorder %s124, %s127
      %p136 = scmp.eq.s32.totalorder %s29, 1
      %p137 = por %p135, %p136
      %p138 = scmp.ne.s32.totalorder %s127, %s128
      %p139 = scmp.eq.s32.totalorder %s29, 0
      %p140 = por %p138, %p139
      %p141 = scmp.ne.s32.totalorder %s127, %s128
      %p142 = scmp.eq.s32.totalorder %s30, 1
      %p143 = por %p141, %p142
      %p145 = scmp.ne.s32.totalorder %s128, %s144
      %p146 = scmp.eq.s32.totalorder %s30, 0
      %p147 = por %p145, %p146
      %s148 = ssub.s32 %s31, %s43
      %p149 = scmp.eq.s32.totalorder %s148, 0
      %s151 = sadd.s32 %s150, 1
      %s152 = scalar_select %p149, %s150, %s151
      %p155 = pneg %p149
      %p156 = scmp.eq.s32.totalorder %s24, 1
      %p157 = por %p155, %p156
      %p158 = scmp.ne.s32.totalorder %s150, %s153
      %p159 = scmp.eq.s32.totalorder %s24, 0
      %p160 = por %p158, %p159
      %p161 = scmp.ne.s32.totalorder %s150, %s153
      %p162 = scmp.eq.s32.totalorder %s29, 1
      %p163 = por %p161, %p162
      %p164 = scmp.ne.s32.totalorder %s153, %s154
      %p165 = scmp.eq.s32.totalorder %s29, 0
      %p166 = por %p164, %p165
      %p167 = scmp.ne.s32.totalorder %s153, %s154
      %p168 = scmp.eq.s32.totalorder %s30, 1
      %p169 = por %p167, %p168
      %p171 = scmp.ne.s32.totalorder %s154, %s170
      %p172 = scmp.eq.s32.totalorder %s30, 0
      %p173 = por %p171, %p172
      %s174 = ssub.s32 %s31, %s43
      %p175 = scmp.eq.s32.totalorder %s174, 0
      %s177 = sadd.s32 %s176, 1
      %s178 = scalar_select %p175, %s176, %s177
      %p181 = pneg %p175
      %p182 = scmp.eq.s32.totalorder %s24, 1
      %p183 = por %p181, %p182
      %p184 = scmp.ne.s32.totalorder %s176, %s179
      %p185 = scmp.eq.s32.totalorder %s24, 0
      %p186 = por %p184, %p185
      %p187 = scmp.ne.s32.totalorder %s176, %s179
      %p188 = scmp.eq.s32.totalorder %s29, 1
      %p189 = por %p187, %p188
      %p190 = scmp.ne.s32.totalorder %s179, %s180
      %p191 = scmp.eq.s32.totalorder %s29, 0
      %p192 = por %p190, %p191
      %p193 = scmp.ne.s32.totalorder %s179, %s180
      %p194 = scmp.eq.s32.totalorder %s30, 1
      %p195 = por %p193, %p194
      %p197 = scmp.ne.s32.totalorder %s180, %s196
      %p198 = scmp.eq.s32.totalorder %s30, 0
      %p199 = por %p197, %p198
      %s201 = sadd.s32 %s200, 1
      %p204 = scmp.eq.s32.totalorder %s24, 1
      %p205 = scmp.ne.s32.totalorder %s200, %s202
      %p206 = scmp.eq.s32.totalorder %s24, 0
      %p207 = por %p205, %p206
      %p208 = scmp.ne.s32.totalorder %s200, %s202
      %p209 = scmp.eq.s32.totalorder %s29, 1
      %p210 = por %p208, %p209
      %p211 = scmp.ne.s32.totalorder %s202, %s203
      %p212 = scmp.eq.s32.totalorder %s29, 0
      %p213 = por %p211, %p212
      %p214 = scmp.ne.s32.totalorder %s202, %s203
      %p215 = scmp.eq.s32.totalorder %s30, 1
      %p216 = por %p214, %p215
      %p218 = scmp.ne.s32.totalorder %s203, %s217
      %p219 = scmp.eq.s32.totalorder %s30, 0
      %p220 = por %p218, %p219
      %s221 = ssub.s32 %s31, %s43
      %s222 = ssub.s32 %s32, %s39
      %s223 = sor.u32 %s221, %s222
      %p224 = scmp.eq.s32.totalorder %s223, 0
      %s226 = sadd.s32 %s225, 1
      %s227 = scalar_select %p224, %s225, %s226
      %p230 = pneg %p224
      %p231 = scmp.eq.s32.totalorder %s24, 1
      %p232 = por %p230, %p231
      %p233 = scmp.ne.s32.totalorder %s225, %s228
      %p234 = scmp.eq.s32.totalorder %s24, 0
      %p235 = por %p233, %p234
      %p236 = scmp.ne.s32.totalorder %s225, %s228
      %p237 = scmp.eq.s32.totalorder %s29, 1
      %p238 = por %p236, %p237
      %p239 = scmp.ne.s32.totalorder %s228, %s229
      %p240 = scmp.eq.s32.totalorder %s29, 0
      %p241 = por %p239, %p240
      %p242 = scmp.ne.s32.totalorder %s228, %s229
      %p243 = scmp.eq.s32.totalorder %s30, 1
      %p244 = por %p242, %p243
      %p246 = scmp.ne.s32.totalorder %s229, %s245
      %p247 = scmp.eq.s32.totalorder %s30, 0
      %p248 = por %p246, %p247
      %s249 = ssub.s32 %s31, %s43
      %s250 = ssub.s32 %s32, %s39
      %s251 = sor.u32 %s249, %s250
      %p252 = scmp.eq.s32.totalorder %s251, 0
      %s254 = sadd.s32 %s253, 1
      %s255 = scalar_select %p252, %s253, %s254
      %p258 = pneg %p252
      %p259 = scmp.eq.s32.totalorder %s24, 1
      %p260 = por %p258, %p259
      %p261 = scmp.ne.s32.totalorder %s253, %s256
      %p262 = scmp.eq.s32.totalorder %s24, 0
      %p263 = por %p261, %p262
      %p264 = scmp.ne.s32.totalorder %s253, %s256
      %p265 = scmp.eq.s32.totalorder %s29, 1
      %p266 = por %p264, %p265
      %p267 = scmp.ne.s32.totalorder %s256, %s257
      %p268 = scmp.eq.s32.totalorder %s29, 0
      %p269 = por %p267, %p268
      %p270 = scmp.ne.s32.totalorder %s256, %s257
      %p271 = scmp.eq.s32.totalorder %s30, 1
      %p272 = por %p270, %p271
      %p274 = scmp.ne.s32.totalorder %s257, %s273
      %p275 = scmp.eq.s32.totalorder %s30, 0
      %p276 = por %p274, %p275
      %p277 = scmp.le.s32.totalorder 1, %s24
      %p278 = scmp.lt.s32.totalorder %s24, 3
      %p279 = pnand %p277, %p278
      %p280 = pneg %p279
      // Predicated region
      $region9: #{tpu_custom_call.1} parent=5 // pred_check
        _
      $region10: #{tpu_custom_call.1} parent=5 // pred_check_branch
        %282 = sbr.rel (%p279) target = $region12
      $region11: #{tpu_custom_call.1} parent=5 // pred_region
        %s283 = ssub.s32 %s24, 1
        // Predicated region
        $region13: #{tpu_custom_call.1} parent=11 // pred_check
          %p284 = pneg %p62
        $region14: #{tpu_custom_call.1} parent=11 // pred_check_branch
          %286 = sbr.rel (%p284) target = $region16
        $region15: #{tpu_custom_call.1} parent=11 // pred_region
          %s287 = smul.u32 2, %s34
          %289 = vsyncadd [#allocation3], 0
          %s290 = smul.addr %s287, 8
          %s291 = scalar_lea.hbm %s0, %s290
          %s292 = sshll.u32 %s291, 4
          %s293 = int_to_ptr.hbm [resolvable:$true] %s292
          %s294 = sshll.u32 [#allocation2], 4
          %s295 = int_to_ptr.vmem [resolvable:$true] %s294
          %300 = dma.hbm_to_vmem [thread:$0]  %s293, 256, %s295, [#allocation3], 128, 128, 8
        $region16: #{tpu_custom_call.1} parent=11 // pred_fallthru
          _
        // Predicated region
        $region17: #{tpu_custom_call.1} parent=11 // pred_check
          %p301 = pneg %p88
        $region18: #{tpu_custom_call.1} parent=11 // pred_check_branch
          %303 = sbr.rel (%p301) target = $region20
        $region19: #{tpu_custom_call.1} parent=11 // pred_region
          %s304 = smul.u32 2, %s34
          %306 = vsyncadd [#allocation7], 0
          %s307 = smul.addr %s304, 8
          %s308 = scalar_lea.hbm %s1, %s307
          %s309 = sshll.u32 %s308, 4
          %s310 = int_to_ptr.hbm [resolvable:$true] %s309
          %s311 = sshll.u32 [#allocation6], 4
          %s312 = int_to_ptr.vmem [resolvable:$true] %s311
          %317 = dma.hbm_to_vmem [thread:$0]  %s310, 256, %s312, [#allocation7], 128, 128, 8
        $region20: #{tpu_custom_call.1} parent=11 // pred_fallthru
          _
        // Predicated region
        $region21: #{tpu_custom_call.1} parent=11 // pred_check
          %p318 = pneg %p213
        $region22: #{tpu_custom_call.1} parent=11 // pred_check_branch
          %320 = sbr.rel (%p318) target = $region24
        $region23: #{tpu_custom_call.1} parent=11 // pred_region
          %322 = vsyncadd [#allocation5], 0
          %s324 = sshll.u32 %s6, 4
          %s325 = int_to_ptr.vmem [resolvable:$true] %s324
          %327 = dma.vmem_to_smem %s325, 16, [#allocation10], [#allocation5]
        $region24: #{tpu_custom_call.1} parent=11 // pred_fallthru
          _
      $region12: #{tpu_custom_call.1} parent=5 // pred_fallthru
        _
      %p328 = scmp.lt.s32.totalorder %s24, 2
      // Predicated region
      $region25: #{tpu_custom_call.1} parent=5 // pred_check
        %p329 = pneg %p328
      $region26: #{tpu_custom_call.1} parent=5 // pred_check_branch
        %331 = sbr.rel (%p329) target = $region28
      $region27: #{tpu_custom_call.1} parent=5 // pred_region
        // Predicated region
        $region29: #{tpu_custom_call.1} parent=27 // pred_check
          %p332 = pneg %p108
        $region30: #{tpu_custom_call.1} parent=27 // pred_check_branch
          %334 = sbr.rel (%p332) target = $region32
        $region31: #{tpu_custom_call.1} parent=27 // pred_region
          %s335 = sand.u32 %s24, 1
          %s336 = scalar_lea.sflag [#allocation3], %s335
          %s337 = sand.u32 %s98, 1
          %s338 = smul.addr %s337, 32
          %s339 = scalar_lea.vmem [#allocation8], %s338
          %341 = vsyncadd %s336, 0
          %s342 = smul.addr %s31, 4
          %s343 = smul.addr %s342, 8
          %s344 = scalar_lea.hbm %s2, %s343
          %s345 = sshll.u32 %s344, 4
          %s346 = int_to_ptr.hbm [resolvable:$true] %s345
          %s347 = sshll.u32 %s339, 4
          %s348 = int_to_ptr.vmem [resolvable:$true] %s347
          %353 = dma.hbm_to_vmem [thread:$0]  %s346, 512, %s348, %s336, 128, 128, 8
        $region32: #{tpu_custom_call.1} parent=27 // pred_fallthru
          _
        // Predicated region
        $region33: #{tpu_custom_call.1} parent=27 // pred_check
          %p354 = pneg %p134
        $region34: #{tpu_custom_call.1} parent=27 // pred_check_branch
          %356 = sbr.rel (%p354) target = $region36
        $region35: #{tpu_custom_call.1} parent=27 // pred_region
          %s357 = sand.u32 %s24, 1
          %s358 = scalar_lea.sflag [#allocation3], %s357
          %s359 = sand.u32 %s124, 1
          %s360 = smul.addr %s359, 32
          %s361 = scalar_lea.vmem [#allocation9], %s360
          %363 = vsyncadd %s358, 0
          %s364 = smul.addr %s31, 4
          %s365 = smul.addr %s364, 8
          %s366 = scalar_lea.hbm %s3, %s365
          %s367 = sshll.u32 %s366, 4
          %s368 = int_to_ptr.hbm [resolvable:$true] %s367
          %s369 = sshll.u32 %s361, 4
          %s370 = int_to_ptr.vmem [resolvable:$true] %s369
          %375 = dma.hbm_to_vmem [thread:$0]  %s368, 512, %s370, %s358, 128, 128, 8
        $region36: #{tpu_custom_call.1} parent=27 // pred_fallthru
          _
        // Predicated region
        $region37: #{tpu_custom_call.1} parent=27 // pred_check
          %p376 = pneg %p160
        $region38: #{tpu_custom_call.1} parent=27 // pred_check_branch
          %378 = sbr.rel (%p376) target = $region40
        $region39: #{tpu_custom_call.1} parent=27 // pred_region
          %p379 = scmp.lt.s32.totalorder %s31, 1
          %s380 = scalar_select %p379, %s31, 1
          %s381 = scalar_lea.vmem %s4, %s380
        $region40: #{tpu_custom_call.1} parent=27 // pred_fallthru
          _
        // Predicated region
        $region41: #{tpu_custom_call.1} parent=27 // pred_check
          %p382 = pneg %p186
        $region42: #{tpu_custom_call.1} parent=27 // pred_check_branch
          %384 = sbr.rel (%p382) target = $region44
        $region43: #{tpu_custom_call.1} parent=27 // pred_region
          %p385 = scmp.lt.s32.totalorder %s31, 1
          %s386 = scalar_select %p385, %s31, 1
          %s387 = scalar_lea.vmem %s5, %s386
        $region44: #{tpu_custom_call.1} parent=27 // pred_fallthru
          _
      $region28: #{tpu_custom_call.1} parent=5 // pred_fallthru
        _
      %p388 = scmp.le.s32.totalorder 1, %s24
      %p389 = scmp.lt.s32.totalorder %s24, 3
      %p390 = pnand %p388, %p389
      %p391 = pneg %p390
      // Predicated region
      $region45: #{tpu_custom_call.1} parent=5 // pred_check
        _
      $region46: #{tpu_custom_call.1} parent=5 // pred_check_branch
        %393 = sbr.rel (%p390) target = $region48
      $region47: #{tpu_custom_call.1} parent=5 // pred_region
        %s394 = ssub.s32 %s24, 1
        // Predicated region
        $region49: #{tpu_custom_call.1} parent=47 // pred_check
          %p395 = pneg %p62
        $region50: #{tpu_custom_call.1} parent=47 // pred_check_branch
          %397 = sbr.rel (%p395) target = $region52
        $region51: #{tpu_custom_call.1} parent=47 // pred_region
          %399 = dma.done [#allocation3], 256
        $region52: #{tpu_custom_call.1} parent=47 // pred_fallthru
          _
        // Predicated region
        $region53: #{tpu_custom_call.1} parent=47 // pred_check
          %p400 = pneg %p88
        $region54: #{tpu_custom_call.1} parent=47 // pred_check_branch
          %402 = sbr.rel (%p400) target = $region56
        $region55: #{tpu_custom_call.1} parent=47 // pred_region
          %404 = dma.done [#allocation7], 256
        $region56: #{tpu_custom_call.1} parent=47 // pred_fallthru
          _
        %s405 = sand.u32 %s29, 1
        %s406 = scalar_lea.sflag [#allocation3], %s405
        %s407 = sand.u32 %s101, 1
        %s408 = smul.addr %s407, 32
        %s409 = scalar_lea.vmem [#allocation8], %s408
        // Predicated region
        $region57: #{tpu_custom_call.1} parent=47 // pred_check
          %p410 = pneg %p114
        $region58: #{tpu_custom_call.1} parent=47 // pred_check_branch
          %412 = sbr.rel (%p410) target = $region60
        $region59: #{tpu_custom_call.1} parent=47 // pred_region
          %414 = dma.done %s406, 512
        $region60: #{tpu_custom_call.1} parent=47 // pred_fallthru
          _
        %s415 = sand.u32 %s29, 1
        %s416 = scalar_lea.sflag [#allocation3], %s415
        %s417 = sand.u32 %s127, 1
        %s418 = smul.addr %s417, 32
        %s419 = scalar_lea.vmem [#allocation9], %s418
        // Predicated region
        $region61: #{tpu_custom_call.1} parent=47 // pred_check
          %p420 = pneg %p140
        $region62: #{tpu_custom_call.1} parent=47 // pred_check_branch
          %422 = sbr.rel (%p420) target = $region64
        $region63: #{tpu_custom_call.1} parent=47 // pred_region
          %424 = dma.done %s416, 512
        $region64: #{tpu_custom_call.1} parent=47 // pred_fallthru
          _
        // Predicated region
        $region65: #{tpu_custom_call.1} parent=47 // pred_check
          %p425 = pneg %p213
        $region66: #{tpu_custom_call.1} parent=47 // pred_check_branch
          %427 = sbr.rel (%p425) target = $region68
        $region67: #{tpu_custom_call.1} parent=47 // pred_region
          %429 = dma.done [#allocation5], 16
        $region68: #{tpu_custom_call.1} parent=47 // pred_fallthru
          _
        %430 = sfence
        %p431 = pneg %p62
        %p432 = pneg %p59
        %p433 = pneg %p88
        %p434 = pneg %p85
        %s435 = sand.u32 %s29, 1
        %s436 = scalar_lea.sflag [#allocation3], %s435
        %s437 = sand.u32 %s101, 1
        %s438 = smul.addr %s437, 32
        %s439 = scalar_lea.vmem [#allocation8], %s438
        %p440 = pneg %p114
        %p441 = pneg %p111
        %s442 = sand.u32 %s29, 1
        %s443 = scalar_lea.sflag [#allocation3], %s442
        %s444 = sand.u32 %s127, 1
        %s445 = smul.addr %s444, 32
        %s446 = scalar_lea.vmem [#allocation9], %s445
        %p447 = pneg %p140
        %p448 = pneg %p137
        %p449 = scmp.lt.s32.totalorder %s33, 1
        %s450 = scalar_select %p449, %s33, 1
        %s451 = scalar_lea.vmem %s4, %s450
        %p452 = pneg %p166
        %p453 = pneg %p163
        %p454 = scmp.lt.s32.totalorder %s33, 1
        %s455 = scalar_select %p454, %s33, 1
        %s456 = scalar_lea.vmem %s5, %s455
        %p457 = pneg %p192
        %p458 = pneg %p189
        %p459 = pneg %p213
        %p460 = pneg %p210
        %p461 = pneg %p241
        %p462 = pneg %p238
        %s463 = sand.u32 %s228, 1
        %s464 = scalar_lea.sflag [#allocation4], %s463
        %s465 = sand.u32 %s228, 1
        %s466 = smul.addr %s465, 16
        %s467 = scalar_lea.vmem [#allocation11], %s466
        %p468 = pneg %p269
        %p469 = pneg %p266
        %s470 = sand.u32 %s256, 1
        %s471 = scalar_lea.sflag [#allocation13], %s470
        %s472 = sand.u32 %s256, 1
        %s473 = smul.addr %s472, 16
        %s474 = scalar_lea.vmem [#allocation12], %s473
        %s475 = smul.u32 2, %s34
        %s476 = smul.u32 2, %s34
        %p477 = scmp.lt.s32.totalorder %s33, 1
        %s478 = scalar_select %p477, %s33, 1
        %s479 = scalar_lea.vmem %s4, %s478
        %p480 = scmp.lt.s32.totalorder %s33, 1
        %s481 = scalar_select %p480, %s33, 1
        %s482 = scalar_lea.vmem %s5, %s481
        %s483 = smul.u32 2, %s34
        %s484 = smul.u32 2, %s34
        %v485 = vld [vmem:[#allocation2] sm:$0xff]
        %v486 = vld [vmem:[#allocation2 + $0x8] sm:$0xff]
        %v487 = vld [vmem:[#allocation6] sm:$0xff]
        %v488 = vld [vmem:[#allocation6 + $0x8] sm:$0xff]
        %vm489 = vcmask 64512
        %v490 = vsel %vm489, %v487, 0.0
        %491 = vadd.xlane.f32.xlu0 %v490
        %v492 = vpop.xlane.xlu0 %491
        %v493 = vsel %vm489, %v488, 0.0
        %494 = vadd.xlane.f32.xlu0 %v493
        %v495 = vpop.xlane.xlu0 %494
        %v496 = vadd.f32 %v492, 1e-06
        %v497 = vadd.f32 %v495, 1e-06
        %v498 = vrcp.pop %v496
        %v499 = vmul.f32 %v496, %v498
        %v500 = vsub.f32 1.0, %v499
        %v501 = vmul.f32 %v498, %v500
        %v502 = vadd.f32 %v498, %v501
        %vm503 = vweird.f32 %v496
        %vm504 = vweird.f32 %v498
        %vm505 = vmor %vm503, %vm504
        %v506 = vsel %vm505, %v498, %v502
        %v507 = vand.u32 2147483647, %v496
        %vm508 = vcmp.eq.f32.partialorder %v507, 8.507059e+37
        %v509 = vand.u32 %v496, 2147483648
        %v510 = vor.u32 1.1754944e-38, %v509
        %v511 = vsel %vm508, %v510, %v506
        %v512 = vmul.f32 %v487, %v511
        %v513 = vrcp.pop %v497
        %v514 = vmul.f32 %v497, %v513
        %v515 = vsub.f32 1.0, %v514
        %v516 = vmul.f32 %v513, %v515
        %v517 = vadd.f32 %v513, %v516
        %vm518 = vweird.f32 %v497
        %vm519 = vweird.f32 %v513
        %vm520 = vmor %vm518, %vm519
        %v521 = vsel %vm520, %v513, %v517
        %v522 = vand.u32 2147483647, %v497
        %vm523 = vcmp.eq.f32.partialorder %v522, 8.507059e+37
        %v524 = vand.u32 %v497, 2147483648
        %v525 = vor.u32 1.1754944e-38, %v524
        %v526 = vsel %vm523, %v525, %v521
        %v527 = vmul.f32 %v488, %v526
        %v529 = vsel %vm489, %v512, 0
        %531 = vmatpush.msra.mxu0 0.0
        %532 = vmatpush.msra.mxu0 0.0
        %533 = vmatpush.msra.mxu0 0.0
        %534 = vmatpush.msra.mxu0 0.0
        %535 = vmatpush.msra.mxu0 0.0
        %536 = vmatpush.msra.mxu0 0.0
        %537 = vmatpush.msra.mxu0 0.0
        %538 = vmatpush.msra.mxu0 0.0
        %539 = vmatpush.msra.mxu0 0.0
        %540 = vmatpush.msra.mxu0 0.0
        %541 = vmatpush.msra.mxu0 0.0
        %542 = vmatpush.msra.mxu0 0.0
        %543 = vmatpush.msra.mxu0 0.0
        %544 = vmatpush.msra.mxu0 0.0
        %545 = vmatpush.msra.mxu0 0.0
        %546 = vmatpush.msra.mxu0 %v485
        %547 = vmatmul.f32.gmra.mxu0 %v529
        %v548 = vpop.f32.mrf.mxu0
        %v549 = vadd.f32 0.0, %v548
        %550 = vdwg.mxu0
        %v552 = vsel %vm489, %v527, 0
        %554 = vmatpush.msra.mxu0 0.0
        %555 = vmatpush.msra.mxu0 0.0
        %556 = vmatpush.msra.mxu0 0.0
        %557 = vmatpush.msra.mxu0 0.0
        %558 = vmatpush.msra.mxu0 0.0
        %559 = vmatpush.msra.mxu0 0.0
        %560 = vmatpush.msra.mxu0 0.0
        %561 = vmatpush.msra.mxu0 0.0
        %562 = vmatpush.msra.mxu0 0.0
        %563 = vmatpush.msra.mxu0 0.0
        %564 = vmatpush.msra.mxu0 0.0
        %565 = vmatpush.msra.mxu0 0.0
        %566 = vmatpush.msra.mxu0 0.0
        %567 = vmatpush.msra.mxu0 0.0
        %568 = vmatpush.msra.mxu0 0.0
        %569 = vmatpush.msra.mxu0 %v486
        %570 = vmatmul.f32.gmra.mxu0 %v552
        %v571 = vpop.f32.mrf.mxu0
        %v572 = vadd.f32 0.0, %v571
        %573 = vdwg.mxu0
        %v574 = vld [vmem:[%s409] sm:$0xff]
        %v575 = vld [vmem:[%s409 + $0x8] sm:$0xff]
        %v576 = vld [vmem:[%s409 + $0x10] sm:$0xff]
        %v577 = vld [vmem:[%s409 + $0x18] sm:$0xff]
        %v578 = vld [vmem:[%s419] sm:$0xff]
        %v579 = vld [vmem:[%s419 + $0x8] sm:$0xff]
        %v580 = vld [vmem:[%s419 + $0x10] sm:$0xff]
        %v581 = vld [vmem:[%s419 + $0x18] sm:$0xff]
        %vm582 = vcmask 261120
        %v584 = vsel %vm582, %v549, 0
        %v587 = vsel %vm582, %v572, 0
        %589 = vmatpush.msra.mxu0 0.0
        %590 = vmatpush.msra.mxu0 0.0
        %591 = vmatpush.msra.mxu0 0.0
        %592 = vmatpush.msra.mxu0 0.0
        %593 = vmatpush.msra.mxu0 0.0
        %594 = vmatpush.msra.mxu0 0.0
        %595 = vmatpush.msra.mxu0 0.0
        %596 = vmatpush.msra.mxu0 0.0
        %597 = vmatpush.msra.mxu0 0.0
        %598 = vmatpush.msra.mxu0 0.0
        %599 = vmatpush.msra.mxu0 0.0
        %600 = vmatpush.msra.mxu0 0.0
        %601 = vmatpush.msra.mxu0 %v581
        %602 = vmatpush.msra.mxu0 %v580
        %603 = vmatpush.msra.mxu0 %v579
        %604 = vmatpush.msra.mxu0 %v578
        %605 = vmatmul.f32.gmra.mxu0 %v584
        %v606 = vpop.f32.mrf.mxu0
        %v607 = vadd.f32 0.0, %v606
        %608 = vmatmul.f32.gmra.mxu0 %v587
        %v609 = vpop.f32.mrf.mxu0
        %v610 = vadd.f32 0.0, %v609
        %611 = vdwg.mxu0
        %v613 = vsel %vm582, %v485, 0
        %v616 = vsel %vm582, %v486, 0
        %618 = vmatpush.msra.mxu0 0.0
        %619 = vmatpush.msra.mxu0 0.0
        %620 = vmatpush.msra.mxu0 0.0
        %621 = vmatpush.msra.mxu0 0.0
        %622 = vmatpush.msra.mxu0 0.0
        %623 = vmatpush.msra.mxu0 0.0
        %624 = vmatpush.msra.mxu0 0.0
        %625 = vmatpush.msra.mxu0 0.0
        %626 = vmatpush.msra.mxu0 0.0
        %627 = vmatpush.msra.mxu0 0.0
        %628 = vmatpush.msra.mxu0 0.0
        %629 = vmatpush.msra.mxu0 0.0
        %630 = vmatpush.msra.mxu0 %v577
        %631 = vmatpush.msra.mxu0 %v576
        %632 = vmatpush.msra.mxu0 %v575
        %633 = vmatpush.msra.mxu0 %v574
        %634 = vmatmul.f32.gmra.mxu0 %v613
        %v635 = vpop.f32.mrf.mxu0
        %v636 = vadd.f32 %v607, %v635
        %637 = vmatmul.f32.gmra.mxu0 %v616
        %v638 = vpop.f32.mrf.mxu0
        %v639 = vadd.f32 %v610, %v638
        %640 = vdwg.mxu0
        %v641 = vld [vmem:[%s479] sm:$0x1]
        %v643 = vperm.slane %v641, 0
        %v645 = vadd.f32 %v636, %v643
        %v646 = vadd.f32 %v639, %v643
        %v647 = vmax.f32 %v645, 0.0
        %v648 = vmax.f32 %v646, 0.0
        %v649 = vld [vmem:[%s482] sm:$0x1]
        %v651 = vperm.slane %v649, 0
        %v653 = vmul.f32 %v647, %v651
        %v654 = vmul.f32 %v648, %v651
        %v656 = vsel %vm582, %v653, 0
        %v659 = vsel %vm582, %v647, 0
        %661 = vmatpush.xpose.msra.mxu0 0.0
        %662 = vmatpush.xpose.msra.mxu0 0.0
        %663 = vmatpush.xpose.msra.mxu0 0.0
        %664 = vmatpush.xpose.msra.mxu0 0.0
        %665 = vmatpush.xpose.msra.mxu0 0.0
        %666 = vmatpush.xpose.msra.mxu0 0.0
        %667 = vmatpush.xpose.msra.mxu0 0.0
        %668 = vmatpush.xpose.msra.mxu0 0.0
        %669 = vmatpush.xpose.msra.mxu0 0.0
        %670 = vmatpush.xpose.msra.mxu0 0.0
        %671 = vmatpush.xpose.msra.mxu0 0.0
        %672 = vmatpush.xpose.msra.mxu0 0.0
        %673 = vmatpush.xpose.msra.mxu0 0.0
        %674 = vmatpush.xpose.msra.mxu0 0.0
        %675 = vmatpush.xpose.msra.mxu0 0.0
        %676 = vmatpush.xpose.msra.mxu0 %v659
        %677 = vmatmul.f32.gmra.mxu0 %v656
        %v678 = vpop.f32.mrf.mxu0
        %v679 = vadd.f32 0.0, %v678
        %680 = vdwg.mxu0
        %v682 = vsel %vm582, %v654, 0
        %v685 = vsel %vm582, %v648, 0
        %687 = vmatpush.xpose.msra.mxu0 0.0
        %688 = vmatpush.xpose.msra.mxu0 0.0
        %689 = vmatpush.xpose.msra.mxu0 0.0
        %690 = vmatpush.xpose.msra.mxu0 0.0
        %691 = vmatpush.xpose.msra.mxu0 0.0
        %692 = vmatpush.xpose.msra.mxu0 0.0
        %693 = vmatpush.xpose.msra.mxu0 0.0
        %694 = vmatpush.xpose.msra.mxu0 0.0
        %695 = vmatpush.xpose.msra.mxu0 0.0
        %696 = vmatpush.xpose.msra.mxu0 0.0
        %697 = vmatpush.xpose.msra.mxu0 0.0
        %698 = vmatpush.xpose.msra.mxu0 0.0
        %699 = vmatpush.xpose.msra.mxu0 0.0
        %700 = vmatpush.xpose.msra.mxu0 0.0
        %701 = vmatpush.xpose.msra.mxu0 0.0
        %702 = vmatpush.xpose.msra.mxu0 %v685
        %703 = vmatmul.f32.gmra.mxu0 %v682
        %v704 = vpop.f32.mrf.mxu0
        %v705 = vadd.f32 0.0, %v704
        %706 = vdwg.mxu0
        %v707 = vmul.f32 %v653, %v647
        %v708 = vmul.f32 %v654, %v648
        %v709 = vsel %vm582, %v707, 0.0
        %710 = vadd.xlane.f32.xlu0 %v709
        %v711 = vpop.xlane.xlu0 %710
        %v712 = vsel %vm582, %v708, 0.0
        %713 = vadd.xlane.f32.xlu0 %v712
        %v714 = vpop.xlane.xlu0 %713
        %v717 = vlaneseq
        %v718 = vand.u32 %v717, 127
        %v719 = vperm.slane %v711, %v718
        %v720 = vperm.slane %v714, %v718
        %vm721 = vcmask 1042434
        %v722 = vsel %vm721, %v719, %v719
        %vm723 = vcmask 1043459
        %v724 = vsel %vm723, %v719, %v722
        %vm725 = vcmask 1044484
        %v726 = vsel %vm725, %v719, %v724
        %vm727 = vcmask 1045509
        %v728 = vsel %vm727, %v719, %v726
        %vm729 = vcmask 1046534
        %v730 = vsel %vm729, %v719, %v728
        %vm731 = vcmask 1047559
        %v732 = vsel %vm731, %v719, %v730
        %v733 = vsel %vm721, %v720, %v720
        %v734 = vsel %vm723, %v720, %v733
        %v735 = vsel %vm725, %v720, %v734
        %v736 = vsel %vm727, %v720, %v735
        %v737 = vsel %vm729, %v720, %v736
        %v738 = vsel %vm731, %v720, %v737
        %v741 = vadd.f32 %v711, %v732
        %v742 = vadd.f32 %v714, %v738
        %v743 = vmul.f32 %v679, 2.0
        %v744 = vmul.f32 %v705, 2.0
        %v745 = vsub.f32 %v741, %v743
        %v746 = vsub.f32 %v742, %v744
        %s747 = sld [smem:[#allocation10 + %s33]]
        %v748 = vstv %s747
        %v749 = vsub.f32 %v748, %v745
        %v750 = vsub.f32 %v748, %v746
        %v751 = vxor.u32 %v749, 2147483648
        %v752 = vxor.u32 %v750, 2147483648
        %v753 = vmul.f32 %v751, 1.442695
        %v754 = vpow.pop %v753
        %v755 = vmul.f32 %v752, 1.442695
        %v756 = vpow.pop %v755
        %v757 = vadd.f32 %v754, 1.0
        %v758 = vadd.f32 %v756, 1.0
        %v759 = vrcp.pop %v757
        %v760 = vmul.f32 %v757, %v759
        %v761 = vsub.f32 1.0, %v760
        %v762 = vmul.f32 %v759, %v761
        %v763 = vadd.f32 %v759, %v762
        %vm764 = vweird.f32 %v757
        %vm765 = vweird.f32 %v759
        %vm766 = vmor %vm764, %vm765
        %v767 = vsel %vm766, %v759, %v763
        %v768 = vand.u32 2147483647, %v757
        %vm769 = vcmp.eq.f32.partialorder %v768, 8.507059e+37
        %v770 = vand.u32 %v757, 2147483648
        %v771 = vor.u32 1.1754944e-38, %v770
        %v772 = vsel %vm769, %v771, %v767
        %v773 = vmul.f32 1.0, %v772
        %v774 = vrcp.pop %v758
        %v775 = vmul.f32 %v758, %v774
        %v776 = vsub.f32 1.0, %v775
        %v777 = vmul.f32 %v774, %v776
        %v778 = vadd.f32 %v774, %v777
        %vm779 = vweird.f32 %v758
        %vm780 = vweird.f32 %v774
        %vm781 = vmor %vm779, %vm780
        %v782 = vsel %vm781, %v774, %v778
        %v783 = vand.u32 2147483647, %v758
        %vm784 = vcmp.eq.f32.partialorder %v783, 8.507059e+37
        %v785 = vand.u32 %v758, 2147483648
        %v786 = vor.u32 1.1754944e-38, %v785
        %v787 = vsel %vm784, %v786, %v782
        %v788 = vmul.f32 1.0, %v787
        %789 = vst.msk [vmem:[%s467] sm:$0xff] %vm582, %v647
        %790 = vst.msk [vmem:[%s467 + $0x8] sm:$0xff] %vm582, %v648
        %791 = vst.msk [vmem:[%s474] sm:$0xff] %vm489, %v773
        %792 = vst.msk [vmem:[%s474 + $0x8] sm:$0xff] %vm489, %v788
        %s793 = sand.u32 %s228, 1
        %s794 = scalar_lea.sflag [#allocation4], %s793
        %s795 = sand.u32 %s228, 1
        %s796 = smul.addr %s795, 16
        %s797 = scalar_lea.vmem [#allocation11], %s796
        %s798 = sand.u32 %s256, 1
        %s799 = scalar_lea.sflag [#allocation13], %s798
        %s800 = sand.u32 %s256, 1
        %s801 = smul.addr %s800, 16
        %s802 = scalar_lea.vmem [#allocation12], %s801
        // Predicated region
        $region69: #{tpu_custom_call.1} parent=47 // pred_check
          %p803 = pneg %p238
        $region70: #{tpu_custom_call.1} parent=47 // pred_check_branch
          %805 = sbr.rel (%p803) target = $region72
        $region71: #{tpu_custom_call.1} parent=47 // pred_region
          %s806 = smul.u32 2, %s34
          %808 = vsyncadd %s794, 0
          %s809 = smul.addr %s33, 2
          %s810 = sadd.s32 %s806, %s809
          %s811 = smul.addr %s810, 8
          %s812 = scalar_lea.hbm %s7, %s811
          %s813 = sshll.u32 %s797, 4
          %s814 = int_to_ptr.vmem [resolvable:$true] %s813
          %s815 = sshll.u32 %s812, 4
          %s816 = int_to_ptr.hbm [resolvable:$true] %s815
          %821 = dma.vmem_to_hbm [thread:$0]  %s814, 256, %s816, %s794, 128, 128, 8
        $region72: #{tpu_custom_call.1} parent=47 // pred_fallthru
          _
        // Predicated region
        $region73: #{tpu_custom_call.1} parent=47 // pred_check
          %p822 = pneg %p266
        $region74: #{tpu_custom_call.1} parent=47 // pred_check_branch
          %824 = sbr.rel (%p822) target = $region76
        $region75: #{tpu_custom_call.1} parent=47 // pred_region
          %s825 = smul.u32 2, %s34
          %827 = vsyncadd %s799, 0
          %s828 = smul.addr %s33, 2
          %s829 = sadd.s32 %s825, %s828
          %s830 = smul.addr %s829, 8
          %s831 = scalar_lea.hbm %s8, %s830
          %s832 = sshll.u32 %s802, 4
          %s833 = int_to_ptr.vmem [resolvable:$true] %s832
          %s834 = sshll.u32 %s831, 4
          %s835 = int_to_ptr.hbm [resolvable:$true] %s834
          %840 = dma.vmem_to_hbm [thread:$0]  %s833, 256, %s835, %s799, 128, 128, 8
        $region76: #{tpu_custom_call.1} parent=47 // pred_fallthru
          _
      $region48: #{tpu_custom_call.1} parent=5 // pred_fallthru
        _
      %p841 = scmp.le.s32.totalorder 2, %s24
      // Predicated region
      $region77: #{tpu_custom_call.1} parent=5 // pred_check
        %p842 = pneg %p841
      $region78: #{tpu_custom_call.1} parent=5 // pred_check_branch
        %844 = sbr.rel (%p842) target = $region80
      $region79: #{tpu_custom_call.1} parent=5 // pred_region
        %s845 = ssub.s32 %s24, 2
        // Predicated region
        $region81: #{tpu_custom_call.1} parent=79 // pred_check
          %p846 = pneg %p244
        $region82: #{tpu_custom_call.1} parent=79 // pred_check_branch
          %848 = sbr.rel (%p846) target = $region84
        $region83: #{tpu_custom_call.1} parent=79 // pred_region
          %s849 = sand.u32 %s229, 1
          %s850 = scalar_lea.sflag [#allocation4], %s849
          %s851 = sand.u32 %s229, 1
          %s852 = smul.addr %s851, 16
          %s853 = scalar_lea.vmem [#allocation11], %s852
          %855 = dma.done %s850, 256
        $region84: #{tpu_custom_call.1} parent=79 // pred_fallthru
          _
        // Predicated region
        $region85: #{tpu_custom_call.1} parent=79 // pred_check
          %p856 = pneg %p272
        $region86: #{tpu_custom_call.1} parent=79 // pred_check_branch
          %858 = sbr.rel (%p856) target = $region88
        $region87: #{tpu_custom_call.1} parent=79 // pred_region
          %s859 = sand.u32 %s257, 1
          %s860 = scalar_lea.sflag [#allocation13], %s859
          %s861 = sand.u32 %s257, 1
          %s862 = smul.addr %s861, 16
          %s863 = scalar_lea.vmem [#allocation12], %s862
          %865 = dma.done %s860, 256
        $region88: #{tpu_custom_call.1} parent=79 // pred_fallthru
          _
      $region80: #{tpu_custom_call.1} parent=5 // pred_fallthru
        _
    $region6: #{tpu_custom_call.1} parent=1 // loop_footer
      %s28 = sadd.s32 1, %s24
    $region7: #{tpu_custom_call.1} parent=1 // loop_footer_branch
      %23 = sbr.rel target = $region3
    $region8: #{tpu_custom_call.1} parent=1 // loop_exit
      _
    %866 = vsyncpa [#allocation3], 1
    %s867 = scalar_lea.sflag [#allocation3], 1
    %868 = vsyncpa %s867, 1
    %869 = vsyncpa [#allocation7], 1
    %870 = vsyncpa [#allocation4], 1
    %s871 = scalar_lea.sflag [#allocation4], 1
    %872 = vsyncpa %s871, 1
    %873 = vsyncpa [#allocation13], 1
    %s874 = scalar_lea.sflag [#allocation13], 1
    %875 = vsyncpa %s874, 1
    %876 = vsyncpa [#allocation5], 1
    %s877 = scalar_lea.sflag [#allocation5], 1
    %878 = vsyncpa %s877, 1

</llo_original>
